<compile_context>
chip_gen: v5e
topology: v5e:2x2
jax: 0.10.0
libtpu: 0.0.40
codegen_flags: <defaults>
</compile_context>

<pallas_src>
import functools

import jax
import jax.numpy as jnp
from jax.experimental import pallas as pl
from jax.experimental.pallas import tpu as pltpu


def _round_up(x, m):
    return ((x + m - 1) // m) * m


def _split_hi_lo(x):
    """Split f32 -> (bf16 hi, bf16 lo) with hi + lo == x up to ~2^-17 relative."""
    hi = x.astype(jnp.bfloat16)
    lo = (x - hi.astype(jnp.float32)).astype(jnp.bfloat16)
    return hi, lo


def _bpr_kernel(tab_ref, rank_ref, ll_ref, prior_ref, auc_ref,
                ll_acc, prior_acc, auc_acc, *, num_factors, batch_size):
    c = pl.program_id(0)            # parallel slice (megacore axis)
    i = pl.program_id(1)            # batch-tile step within this slice
    steps = pl.num_programs(1)

    F = num_factors
    two_f = 2 * F
    num_bonds = tab_ref.shape[1]
    tile_b = rank_ref.shape[1]

    # Zero the lane-dense accumulators at the start of every slice.
    @pl.when(i == 0)
    def _init():
        ll_acc[...] = jnp.zeros_like(ll_acc)
        prior_acc[...] = jnp.zeros_like(prior_acc)
        auc_acc[...] = jnp.zeros_like(auc_acc)

    tab = tab_ref[...]                                   # (2F+2, N) bf16, VMEM resident
    idx = rank_ref[...]                                  # (3, tile_b) int32

    # One-hot right operands: compares/combines in f32 (native on all VPUs),
    # cast once to bf16 (values {-1,0,1,2,3} are exact in bf16).
    bond_iota = jax.lax.broadcasted_iota(jnp.int32, (num_bonds, tile_b), 0)
    oh_bond = (idx[0:1, :] == bond_iota).astype(jnp.float32)
    oh_bet = (idx[1:2, :] == bond_iota).astype(jnp.float32)
    oh_wor = (idx[2:3, :] == bond_iota).astype(jnp.float32)

    r_bond = oh_bond.astype(jnp.bfloat16)
    r_diff = (oh_bet - oh_wor).astype(jnp.bfloat16)
    r_sum3 = (oh_bond + oh_bet + oh_wor).astype(jnp.bfloat16)

    def gather(rhs):
        # bf16 x bf16 DEFAULT-precision MXU matmul, f32 accumulate (exact row select).
        return jnp.dot(tab, rhs, preferred_element_type=jnp.float32)

    g_bond = gather(r_bond)                              # (2F+2, tile_b) f32
    g_diff = gather(r_diff)                              # (2F+2, tile_b) f32
    g_sq = gather(r_sum3)                                # only sq rows used

    bond_e = g_bond[0:F, :] + g_bond[F:two_f, :]         # hi + lo -> (F, tile_b) f32
    diff_e = g_diff[0:F, :] + g_diff[F:two_f, :]
    sq_sum = jnp.sum(g_sq[two_f:two_f + 2, :], axis=0, keepdims=True)   # (1, tile_b)

    # dot_diff = bond . (better - worse), one value per lane (row of the batch).
    dot_diff = jnp.sum(bond_e * diff_e, axis=0, keepdims=True)          # (1, tile_b)

    # Numerically stable logsigmoid: min(x, 0) - log(1 + exp(-|x|)).
    logsig = jnp.minimum(dot_diff, 0.0) - jnp.log(1.0 + jnp.exp(-jnp.abs(dot_diff)))

    # Mask the padded tail rows past the true batch size.
    t = c * steps + i                                    # global tile index
    row = jax.lax.broadcasted_iota(jnp.int32, (1, tile_b), 1) + t * tile_b
    maskf = (row < batch_size).astype(jnp.float32)

    # Lane-dense accumulation: pure VPU adds, no per-step cross-lane reduce.
    ll_acc[...] += logsig * maskf
    auc_acc[...] += (dot_diff > 0.0).astype(jnp.float32) * maskf
    prior_acc[...] += sq_sum * maskf

    # Per-slice epilogue: one cross-lane reduction per quantity, write raw sums.
    @pl.when(i == steps - 1)
    def _finalize():
        ll_ref[...] = jnp.sum(ll_acc[...]).reshape(1, 1, 1)
        auc_ref[...] = jnp.sum(auc_acc[...]).reshape(1, 1, 1)
        prior_ref[...] = jnp.sum(prior_acc[...]).reshape(1, 1, 1)


def bpr_forward(embedding, rankings, regularization_lambda=1e-7,
                tile_b=1024, parallel_slices=2):
    """Replicates BPRModel.forward.

    embedding: [num_bonds, num_factors] float32
    rankings:  [B, 3] int32 (columns: bond, better_rec, worse_rec)
    returns:   (log_likelihood, prior, auc) float32 scalars
    """
    embedding = jnp.asarray(embedding, dtype=jnp.float32)
    rankings = jnp.asarray(rankings, dtype=jnp.int32)

    num_bonds, num_factors = embedding.shape
    batch = int(rankings.shape[0])

    # One-hot gather regime guard: compute / VMEM scale with num_bonds * tile_b.
    # TODO(synk): scalar-prefetch / pl.Element (or manual DMA) row-gather path for
    # embedding tables beyond this size.
    assert num_bonds <= 2048, "fused one-hot gather path requires num_bonds <= 2048"

    # Build the stacked bf16 table ONCE: [emb_hi; emb_lo; sq_hi; sq_lo]  (2F+2, N).
    emb_t = embedding.T                                        # (F, N)
    sq = jnp.sum(embedding * embedding, axis=1)[None, :]       # (1, N)  exact f32
    emb_hi, emb_lo = _split_hi_lo(emb_t)
    sq_hi, sq_lo = _split_hi_lo(sq)
    tab = jnp.concatenate([emb_hi, emb_lo, sq_hi, sq_lo], axis=0)

    tab_bytes = int(tab.shape[0]) * int(tab.shape[1]) * 2
    assert tab_bytes <= 4 * 1024 * 1024, "bf16 table must stay well inside VMEM"

    # Lane-dense batch tiling: batch on the 128-lane axis.
    tile_b = max(128, _round_up(int(tile_b), 128))
    tile_b = min(tile_b, _round_up(batch, 128))
    num_tiles = pl.cdiv(batch, tile_b)
    slices = max(1, min(int(parallel_slices), num_tiles))      # megacore split (v7x)
    steps = pl.cdiv(num_tiles, slices)
    padded = slices * steps * tile_b

    rank_t = rankings.T                                        # (3, B)
    if padded != batch:
        rank_t = jnp.pad(rank_t, ((0, 0), (0, padded - batch)))  # index 0, masked

    kernel = functools.partial(
        _bpr_kernel, num_factors=int(num_factors), batch_size=batch)

    part_shape = jax.ShapeDtypeStruct((slices, 1, 1), jnp.float32)
    part_spec = pl.BlockSpec((1, 1, 1), lambda c, i: (c, 0, 0))

    cost = pl.CostEstimate(
        flops=int(padded * (6 * (2 * num_factors + 2) * num_bonds
                            + 30 * num_bonds + 12 * num_factors + 32)),
        transcendentals=int(2 * padded),
        bytes_accessed=int(tab_bytes + padded * 3 * 4 + 3 * slices * 4),
    )

    ll_p, prior_p, auc_p = pl.pallas_call(
        kernel,
        out_shape=(part_shape, part_shape, part_shape),
        grid=(slices, steps),
        in_specs=[
            # bf16 table: constant block index -> DMA'd once, VMEM resident.
            pl.BlockSpec((2 * num_factors + 2, num_bonds), lambda c, i: (0, 0)),
            # Index tile for this (slice, step): lane-dense (3, tile_b).
            pl.BlockSpec((3, tile_b), lambda c, i: (0, c * steps + i)),
        ],
        out_specs=(part_spec, part_spec, part_spec),
        scratch_shapes=[pltpu.VMEM((1, tile_b), jnp.float32)] * 3,
        compiler_params=pltpu.CompilerParams(
            dimension_semantics=("parallel", "arbitrary"),
            vmem_limit_bytes=48 * 1024 * 1024,
        ),
        cost_estimate=cost,
    )(tab, rank_t)

    inv_b = jnp.float32(1.0 / batch)
    log_likelihood = jnp.sum(ll_p) * inv_b
    prior = jnp.sum(prior_p) * jnp.float32(regularization_lambda)
    auc = jnp.sum(auc_p) * inv_b
    return log_likelihood, prior, auc


if __name__ == "__main__":
    key = jax.random.PRNGKey(0)
    k_emb, k_rank, k_rank2 = jax.random.split(key, 3)

    num_bonds, num_factors = 64, 32
    lam = 1e-7

    # nn.Embedding default init: N(0, 1)
    embedding = jax.random.normal(k_emb, (num_bonds, num_factors), dtype=jnp.float32)

    def reference(emb, rk):
        b_e = jnp.take(emb, rk[:, 0], axis=0)
        bet_e = jnp.take(emb, rk[:, 1], axis=0)
        w_e = jnp.take(emb, rk[:, 2], axis=0)
        dd = jnp.sum(b_e * bet_e, axis=1) - jnp.sum(b_e * w_e, axis=1)
        ll = jnp.mean(jax.nn.log_sigmoid(dd))
        auc = jnp.mean((dd > 0).astype(jnp.float32))
        pr = lam * (jnp.sum(b_e * b_e) + jnp.sum(bet_e * bet_e) + jnp.sum(w_e * w_e))
        return ll, pr, auc

    def check(rk, **kw):
        ll, prior, auc = bpr_forward(embedding, rk, lam, **kw)
        jax.block_until_ready((ll, prior, auc))
        ll_r, pr_r, auc_r = reference(embedding, rk)
        assert jnp.allclose(ll, ll_r, atol=5e-4, rtol=1e-3), (ll, ll_r)
        assert jnp.allclose(prior, pr_r, rtol=1e-3, atol=1e-9), (prior, pr_r)
        assert jnp.allclose(auc, auc_r, atol=2e-3), (auc, auc_r)

    # Case 1: tiny batch -> single 128-wide tile, single slice.
    check(jax.random.randint(k_rank, (8, 3), 0, num_bonds, dtype=jnp.int32))

    # Case 2: 1000 rows, default wide tile, masked padded tail.
    rankings2 = jax.random.randint(k_rank2, (1000, 3), 0, num_bonds, dtype=jnp.int32)
    check(rankings2)

    # Case 3: same rows with small tiles + 2 parallel slices (exercises accumulation
    # across both grid axes, per-slice partial outputs, and the wrapper-side sum).
    check(rankings2, tile_b=128, parallel_slices=2)

    print("KERNEL_OK")
</pallas_src>

<mosaic_0001>
module attributes {stable_mosaic.version = 11 : i64} {
  func.func @_bpr_kernel(%arg0: i32, %arg1: i32, %arg2: memref<66x64xbf16, #tpu.memory_space<vmem>>, %arg3: memref<3x128xi32, #tpu.memory_space<vmem>>, %arg4: memref<1x1x1xf32, #tpu.memory_space<vmem>>, %arg5: memref<1x1x1xf32, #tpu.memory_space<vmem>>, %arg6: memref<1x1x1xf32, #tpu.memory_space<vmem>>, %arg7: memref<1x128xf32, #tpu.memory_space<vmem>>, %arg8: memref<1x128xf32, #tpu.memory_space<vmem>>, %arg9: memref<1x128xf32, #tpu.memory_space<vmem>>) attributes {dimension_semantics = [#tpu.dimension_semantics<parallel>, #tpu.dimension_semantics<arbitrary>], iteration_bounds = array<i64: 1, 1>, scalar_prefetch = 0 : i64, scratch_operands = 3 : i64, tpu.core_type = #tpu.core_type<tc>, window_params = [{pipeline_mode = #tpu.pipeline_mode<synchronous>, transform_indices = @transform_0, window_bounds = array<i64: 66, 64>}, {transform_indices = @transform_1, window_bounds = array<i64: 3, 128>}, {transform_indices = @transform_2, window_bounds = array<i64: 1, 1, 1>}, {transform_indices = @transform_3, window_bounds = array<i64: 1, 1, 1>}, {transform_indices = @transform_4, window_bounds = array<i64: 1, 1, 1>}]} {
    %c0_i32 = arith.constant 0 : i32
    %0 = arith.cmpi eq, %arg1, %c0_i32 : i32
    %1 = arith.extui %0 : i1 to i32
    %c0_i32_0 = arith.constant 0 : i32
    %2 = arith.cmpi ne, %1, %c0_i32_0 : i32
    scf.if %2 {
      %cst_26 = arith.constant 0.000000e+00 : f32
      %81 = vector.broadcast %cst_26 : f32 to vector<1x128xf32>
      %c0_27 = arith.constant 0 : index
      %c0_28 = arith.constant 0 : index
      %82 = vector.load %arg7[%c0_27, %c0_28] : memref<1x128xf32, #tpu.memory_space<vmem>>, vector<1x128xf32>
      tpu.vector_store %arg7[%c0_27, %c0_28], %81 {strides = array<i32>} : memref<1x128xf32, #tpu.memory_space<vmem>>, vector<1x128xf32>,
      %cst_29 = arith.constant 0.000000e+00 : f32
      %83 = vector.broadcast %cst_29 : f32 to vector<1x128xf32>
      %c0_30 = arith.constant 0 : index
      %c0_31 = arith.constant 0 : index
      %84 = vector.load %arg8[%c0_30, %c0_31] : memref<1x128xf32, #tpu.memory_space<vmem>>, vector<1x128xf32>
      tpu.vector_store %arg8[%c0_30, %c0_31], %83 {strides = array<i32>} : memref<1x128xf32, #tpu.memory_space<vmem>>, vector<1x128xf32>,
      %cst_32 = arith.constant 0.000000e+00 : f32
      %85 = vector.broadcast %cst_32 : f32 to vector<1x128xf32>
      %c0_33 = arith.constant 0 : index
      %c0_34 = arith.constant 0 : index
      %86 = vector.load %arg9[%c0_33, %c0_34] : memref<1x128xf32, #tpu.memory_space<vmem>>, vector<1x128xf32>
      tpu.vector_store %arg9[%c0_33, %c0_34], %85 {strides = array<i32>} : memref<1x128xf32, #tpu.memory_space<vmem>>, vector<1x128xf32>,
    } else {
    }
    %c0 = arith.constant 0 : index
    %c0_1 = arith.constant 0 : index
    %3 = vector.load %arg2[%c0, %c0_1] : memref<66x64xbf16, #tpu.memory_space<vmem>>, vector<66x64xbf16>
    %c0_2 = arith.constant 0 : index
    %c0_3 = arith.constant 0 : index
    %4 = vector.load %arg3[%c0_2, %c0_3] : memref<3x128xi32, #tpu.memory_space<vmem>>, vector<3x128xi32>
    %5 = tpu.iota {dimensions = array<i32: 0>} : vector<64x128xi32>
    %6 = vector.extract_strided_slice %4 {offsets = [0, 0], sizes = [1, 128], strides = [1, 1]} : vector<3x128xi32> to vector<1x128xi32>
    %7 = vector.broadcast %6 : vector<1x128xi32> to vector<64x128xi32>
    %8 = arith.cmpi eq, %7, %5 : vector<64x128xi32>
    %9 = arith.extui %8 : vector<64x128xi1> to vector<64x128xi32>
    %10 = arith.sitofp %9 : vector<64x128xi32> to vector<64x128xf32>
    %11 = vector.extract_strided_slice %4 {offsets = [1, 0], sizes = [1, 128], strides = [1, 1]} : vector<3x128xi32> to vector<1x128xi32>
    %12 = vector.broadcast %11 : vector<1x128xi32> to vector<64x128xi32>
    %13 = arith.cmpi eq, %12, %5 : vector<64x128xi32>
    %14 = arith.extui %13 : vector<64x128xi1> to vector<64x128xi32>
    %15 = arith.sitofp %14 : vector<64x128xi32> to vector<64x128xf32>
    %16 = vector.extract_strided_slice %4 {offsets = [2, 0], sizes = [1, 128], strides = [1, 1]} : vector<3x128xi32> to vector<1x128xi32>
    %17 = vector.broadcast %16 : vector<1x128xi32> to vector<64x128xi32>
    %18 = arith.cmpi eq, %17, %5 : vector<64x128xi32>
    %19 = arith.extui %18 : vector<64x128xi1> to vector<64x128xi32>
    %20 = arith.sitofp %19 : vector<64x128xi32> to vector<64x128xf32>
    %21 = arith.truncf %10 : vector<64x128xf32> to vector<64x128xbf16>
    %22 = arith.subf %15, %20 : vector<64x128xf32>
    %23 = arith.truncf %22 : vector<64x128xf32> to vector<64x128xbf16>
    %24 = arith.addf %10, %15 : vector<64x128xf32>
    %25 = arith.addf %24, %20 : vector<64x128xf32>
    %26 = arith.truncf %25 : vector<64x128xf32> to vector<64x128xbf16>
    %cst = arith.constant dense<0.000000e+00> : vector<66x128xf32>
    %27 = tpu.matmul %3, %21, %cst {dimension_numbers = #tpu.dot_dimension_numbers<[1], [0], [0], [1], [0, 0, 1, 1], [], []>} : vector<66x64xbf16>, vector<64x128xbf16>, vector<66x128xf32> -> vector<66x128xf32>
    %cst_4 = arith.constant dense<0.000000e+00> : vector<66x128xf32>
    %28 = tpu.matmul %3, %23, %cst_4 {dimension_numbers = #tpu.dot_dimension_numbers<[1], [0], [0], [1], [0, 0, 1, 1], [], []>} : vector<66x64xbf16>, vector<64x128xbf16>, vector<66x128xf32> -> vector<66x128xf32>
    %cst_5 = arith.constant dense<0.000000e+00> : vector<66x128xf32>
    %29 = tpu.matmul %3, %26, %cst_5 {dimension_numbers = #tpu.dot_dimension_numbers<[1], [0], [0], [1], [0, 0, 1, 1], [], []>} : vector<66x64xbf16>, vector<64x128xbf16>, vector<66x128xf32> -> vector<66x128xf32>
    %30 = vector.extract_strided_slice %27 {offsets = [0, 0], sizes = [32, 128], strides = [1, 1]} : vector<66x128xf32> to vector<32x128xf32>
    %31 = vector.extract_strided_slice %27 {offsets = [32, 0], sizes = [32, 128], strides = [1, 1]} : vector<66x128xf32> to vector<32x128xf32>
    %32 = arith.addf %30, %31 : vector<32x128xf32>
    %33 = vector.extract_strided_slice %28 {offsets = [0, 0], sizes = [32, 128], strides = [1, 1]} : vector<66x128xf32> to vector<32x128xf32>
    %34 = vector.extract_strided_slice %28 {offsets = [32, 0], sizes = [32, 128], strides = [1, 1]} : vector<66x128xf32> to vector<32x128xf32>
    %35 = arith.addf %33, %34 : vector<32x128xf32>
    %36 = vector.extract_strided_slice %29 {offsets = [64, 0], sizes = [2, 128], strides = [1, 1]} : vector<66x128xf32> to vector<2x128xf32>
    %cst_6 = arith.constant dense<0.000000e+00> : vector<128xf32>
    %37 = vector.multi_reduction <add>, %36, %cst_6 [0] : vector<2x128xf32> to vector<128xf32>
    %38 = vector.shape_cast %37 : vector<128xf32> to vector<1x128xf32>
    %39 = arith.mulf %32, %35 : vector<32x128xf32>
    %cst_7 = arith.constant dense<0.000000e+00> : vector<128xf32>
    %40 = vector.multi_reduction <add>, %39, %cst_7 [0] : vector<32x128xf32> to vector<128xf32>
    %41 = vector.shape_cast %40 : vector<128xf32> to vector<1x128xf32>
    %cst_8 = arith.constant 0.000000e+00 : f32
    %42 = vector.broadcast %cst_8 : f32 to vector<1x128xf32>
    %43 = arith.minimumf %41, %42 : vector<1x128xf32>
    %44 = math.absf %41 : vector<1x128xf32>
    %cst_9 = arith.constant 0.000000e+00 : f32
    %45 = vector.broadcast %cst_9 : f32 to vector<1x128xf32>
    %46 = arith.subf %45, %44 : vector<1x128xf32>
    %47 = math.exp %46 : vector<1x128xf32>
    %cst_10 = arith.constant 1.000000e+00 : f32
    %48 = vector.broadcast %cst_10 : f32 to vector<1x128xf32>
    %49 = arith.addf %48, %47 : vector<1x128xf32>
    %50 = math.log %49 : vector<1x128xf32>
    %51 = arith.subf %43, %50 : vector<1x128xf32>
    %c1_i32 = arith.constant 1 : i32
    %52 = arith.muli %arg0, %c1_i32 : i32
    %53 = arith.addi %52, %arg1 : i32
    %54 = tpu.iota {dimensions = array<i32: 1>} : vector<1x128xi32>
    %c128_i32 = arith.constant 128 : i32
    %55 = arith.muli %53, %c128_i32 : i32
    %56 = vector.broadcast %55 : i32 to vector<1x128xi32>
    %57 = arith.addi %54, %56 : vector<1x128xi32>
    %c8_i32 = arith.constant 8 : i32
    %58 = vector.broadcast %c8_i32 : i32 to vector<1x128xi32>
    %59 = arith.cmpi slt, %57, %58 : vector<1x128xi32>
    %60 = arith.extui %59 : vector<1x128xi1> to vector<1x128xi32>
    %61 = arith.sitofp %60 : vector<1x128xi32> to vector<1x128xf32>
    %c0_11 = arith.constant 0 : index
    %c0_12 = arith.constant 0 : index
    %62 = vector.load %arg7[%c0_11, %c0_12] : memref<1x128xf32, #tpu.memory_space<vmem>>, vector<1x128xf32>
    %63 = arith.mulf %51, %61 : vector<1x128xf32>
    %64 = arith.addf %62, %63 : vector<1x128xf32>
    %c0_13 = arith.constant 0 : index
    %c0_14 = arith.constant 0 : index
    %65 = vector.load %arg7[%c0_13, %c0_14] : memref<1x128xf32, #tpu.memory_space<vmem>>, vector<1x128xf32>
    tpu.vector_store %arg7[%c0_13, %c0_14], %64 {strides = array<i32>} : memref<1x128xf32, #tpu.memory_space<vmem>>, vector<1x128xf32>,
    %c0_15 = arith.constant 0 : index
    %c0_16 = arith.constant 0 : index
    %66 = vector.load %arg9[%c0_15, %c0_16] : memref<1x128xf32, #tpu.memory_space<vmem>>, vector<1x128xf32>
    %cst_17 = arith.constant 0.000000e+00 : f32
    %67 = vector.broadcast %cst_17 : f32 to vector<1x128xf32>
    %68 = arith.cmpf ogt, %41, %67 : vector<1x128xf32>
    %69 = arith.extui %68 : vector<1x128xi1> to vector<1x128xi32>
    %70 = arith.sitofp %69 : vector<1x128xi32> to vector<1x128xf32>
    %71 = arith.mulf %70, %61 : vector<1x128xf32>
    %72 = arith.addf %66, %71 : vector<1x128xf32>
    %c0_18 = arith.constant 0 : index
    %c0_19 = arith.constant 0 : index
    %73 = vector.load %arg9[%c0_18, %c0_19] : memref<1x128xf32, #tpu.memory_space<vmem>>, vector<1x128xf32>
    tpu.vector_store %arg9[%c0_18, %c0_19], %72 {strides = array<i32>} : memref<1x128xf32, #tpu.memory_space<vmem>>, vector<1x128xf32>,
    %c0_20 = arith.constant 0 : index
    %c0_21 = arith.constant 0 : index
    %74 = vector.load %arg8[%c0_20, %c0_21] : memref<1x128xf32, #tpu.memory_space<vmem>>, vector<1x128xf32>
    %75 = arith.mulf %38, %61 : vector<1x128xf32>
    %76 = arith.addf %74, %75 : vector<1x128xf32>
    %c0_22 = arith.constant 0 : index
    %c0_23 = arith.constant 0 : index
    %77 = vector.load %arg8[%c0_22, %c0_23] : memref<1x128xf32, #tpu.memory_space<vmem>>, vector<1x128xf32>
    tpu.vector_store %arg8[%c0_22, %c0_23], %76 {strides = array<i32>} : memref<1x128xf32, #tpu.memory_space<vmem>>, vector<1x128xf32>,
    %c0_i32_24 = arith.constant 0 : i32
    %78 = arith.cmpi eq, %arg1, %c0_i32_24 : i32
    %79 = arith.extui %78 : i1 to i32
    %c0_i32_25 = arith.constant 0 : i32
    %80 = arith.cmpi ne, %79, %c0_i32_25 : i32
    scf.if %80 {
      %c0_26 = arith.constant 0 : index
      %c0_27 = arith.constant 0 : index
      %81 = vector.load %arg7[%c0_26, %c0_27] : memref<1x128xf32, #tpu.memory_space<vmem>>, vector<1x128xf32>
      %82 = vector.shape_cast %81 : vector<1x128xf32> to vector<1x1x128xf32>
      %cst_28 = arith.constant dense<0.000000e+00> : vector<1xf32>
      %83 = vector.multi_reduction <add>, %82, %cst_28 [1, 2] : vector<1x1x128xf32> to vector<1xf32>
      %84 = vector.shape_cast %83 : vector<1xf32> to vector<1x1x1xf32>
      %85 = vector.extract %84[0, 0, 0] : f32 from vector<1x1x1xf32>
      %86 = vector.broadcast %85 : f32 to vector<1x1x1xf32>
      %c0_29 = arith.constant 0 : index
      %c0_30 = arith.constant 0 : index
      %c0_31 = arith.constant 0 : index
      %87 = vector.load %arg4[%c0_29, %c0_30, %c0_31] : memref<1x1x1xf32, #tpu.memory_space<vmem>>, vector<1x1x1xf32>
      tpu.vector_store %arg4[%c0_29, %c0_30, %c0_31], %86 {strides = array<i32>} : memref<1x1x1xf32, #tpu.memory_space<vmem>>, vector<1x1x1xf32>,
      %c0_32 = arith.constant 0 : index
      %c0_33 = arith.constant 0 : index
      %88 = vector.load %arg9[%c0_32, %c0_33] : memref<1x128xf32, #tpu.memory_space<vmem>>, vector<1x128xf32>
      %89 = vector.shape_cast %88 : vector<1x128xf32> to vector<1x1x128xf32>
      %cst_34 = arith.constant dense<0.000000e+00> : vector<1xf32>
      %90 = vector.multi_reduction <add>, %89, %cst_34 [1, 2] : vector<1x1x128xf32> to vector<1xf32>
      %91 = vector.shape_cast %90 : vector<1xf32> to vector<1x1x1xf32>
      %92 = vector.extract %91[0, 0, 0] : f32 from vector<1x1x1xf32>
      %93 = vector.broadcast %92 : f32 to vector<1x1x1xf32>
      %c0_35 = arith.constant 0 : index
      %c0_36 = arith.constant 0 : index
      %c0_37 = arith.constant 0 : index
      %94 = vector.load %arg6[%c0_35, %c0_36, %c0_37] : memref<1x1x1xf32, #tpu.memory_space<vmem>>, vector<1x1x1xf32>
      tpu.vector_store %arg6[%c0_35, %c0_36, %c0_37], %93 {strides = array<i32>} : memref<1x1x1xf32, #tpu.memory_space<vmem>>, vector<1x1x1xf32>,
      %c0_38 = arith.constant 0 : index
      %c0_39 = arith.constant 0 : index
      %95 = vector.load %arg8[%c0_38, %c0_39] : memref<1x128xf32, #tpu.memory_space<vmem>>, vector<1x128xf32>
      %96 = vector.shape_cast %95 : vector<1x128xf32> to vector<1x1x128xf32>
      %cst_40 = arith.constant dense<0.000000e+00> : vector<1xf32>
      %97 = vector.multi_reduction <add>, %96, %cst_40 [1, 2] : vector<1x1x128xf32> to vector<1xf32>
      %98 = vector.shape_cast %97 : vector<1xf32> to vector<1x1x1xf32>
      %99 = vector.extract %98[0, 0, 0] : f32 from vector<1x1x1xf32>
      %100 = vector.broadcast %99 : f32 to vector<1x1x1xf32>
      %c0_41 = arith.constant 0 : index
      %c0_42 = arith.constant 0 : index
      %c0_43 = arith.constant 0 : index
      %101 = vector.load %arg5[%c0_41, %c0_42, %c0_43] : memref<1x1x1xf32, #tpu.memory_space<vmem>>, vector<1x1x1xf32>
      tpu.vector_store %arg5[%c0_41, %c0_42, %c0_43], %100 {strides = array<i32>} : memref<1x1x1xf32, #tpu.memory_space<vmem>>, vector<1x1x1xf32>,
    } else {
    }
    return
  }
  func.func @transform_0(%arg0: i32, %arg1: i32) -> (i32, i32) {
    %c0_i32 = arith.constant 0 : i32
    %c0_i32_0 = arith.constant 0 : i32
    %c0_i32_1 = arith.constant 0 : i32
    return %c0_i32, %c0_i32_0 : i32, i32
  }
  func.func @transform_1(%arg0: i32, %arg1: i32) -> (i32, i32) {
    %c1_i32 = arith.constant 1 : i32
    %0 = arith.muli %arg0, %c1_i32 : i32
    %1 = arith.addi %0, %arg1 : i32
    %c0_i32 = arith.constant 0 : i32
    %c0_i32_0 = arith.constant 0 : i32
    return %c0_i32, %1 : i32, i32
  }
  func.func @transform_2(%arg0: i32, %arg1: i32) -> (i32, i32, i32) {
    %c0_i32 = arith.constant 0 : i32
    %c0_i32_0 = arith.constant 0 : i32
    %c0_i32_1 = arith.constant 0 : i32
    return %arg0, %c0_i32, %c0_i32_0 : i32, i32, i32
  }
  func.func @transform_3(%arg0: i32, %arg1: i32) -> (i32, i32, i32) {
    %c0_i32 = arith.constant 0 : i32
    %c0_i32_0 = arith.constant 0 : i32
    %c0_i32_1 = arith.constant 0 : i32
    return %arg0, %c0_i32, %c0_i32_0 : i32, i32, i32
  }
  func.func @transform_4(%arg0: i32, %arg1: i32) -> (i32, i32, i32) {
    %c0_i32 = arith.constant 0 : i32
    %c0_i32_0 = arith.constant 0 : i32
    %c0_i32_1 = arith.constant 0 : i32
    return %arg0, %c0_i32, %c0_i32_0 : i32, i32, i32
  }
}

</mosaic_0001>

<llo_original>
// kernel: tpu_custom_call.1
$region0: #{tpu_custom_call.1}
  #allocation0 [shape = 'u32[]', space=smem, size = 0x4, offset = 0x4, fixed_abs, tag = 'smem constant byte address 0x4 - core index']
  #allocation1 [shape = 'u32[72,128]{1,0:T(1,128)}', space=vmem, size = 0x9000, scoped, tag = 'internal scratch']
  #allocation2 [shape = 'f32[1,128]{1,0:T(1,128)}', space=vmem, size = 0x200, scoped, tag = 'scratch operand']
  #allocation3 [shape = 'f32[1,128]{1,0:T(1,128)}', space=vmem, size = 0x200, scoped, tag = 'scratch operand']
  #allocation4 [shape = 'f32[1,128]{1,0:T(1,128)}', space=vmem, size = 0x200, scoped, tag = 'scratch operand']
  %s0 = inlined_call_operand.vmem [shape: bf16[66,64], index: 0, kind: input, shape index: {}]
  %s1 = inlined_call_operand.vmem [shape: s32[3,128], index: 1, kind: input, shape index: {}]
  %s2 = inlined_call_operand.hbm [shape: f32[1,1,1], index: 2, kind: output, shape index: {0}]
  %s3 = inlined_call_operand.hbm [shape: f32[1,1,1], index: 3, kind: output, shape index: {1}]
  %s4 = inlined_call_operand.hbm [shape: f32[1,1,1], index: 4, kind: output, shape index: {2}]
  %5 = xla_tuple %s2, %s3, %s4
  %s6 = sld [smem:[#allocation0]]
  $region42: #{tpu_custom_call.1} parent=0
    _
  %s8 = ssub.s32 1, %s6
  %s9 = scalar_select 0, %s8, %s6
  $region1: #{tpu_custom_call.1} parent=0
    #allocation5 [shape = 'u8[512]{0}', space=vmem, size = 0x400, scoped, tag = 'output window, operand 0, single buffered']
    #allocation6 [shape = 's32[1]{0}', space=sflag, size = 0x4, scoped, tag = 'scoped memory for tpu_custom_call.1']
    #allocation7 [shape = 'u8[512]{0}', space=vmem, size = 0x400, scoped, tag = 'output window, operand 1, single buffered']
    #allocation8 [shape = 's32[1]{0}', space=sflag, size = 0x4, scoped, tag = 'scoped memory for tpu_custom_call.1']
    #allocation9 [shape = 'u8[512]{0}', space=vmem, size = 0x400, scoped, tag = 'output window, operand 2, single buffered']
    %10 = vsyncpa [#allocation6], 0
    %11 = vsyncpa [#allocation8], 0
    // Predicated region
    $region2: #{tpu_custom_call.1} parent=1 // pred_check
      _
    $region3: #{tpu_custom_call.1} parent=1 // pred_check_branch
      %13 = sbr.rel (0) target = $region5
    $region4: #{tpu_custom_call.1} parent=1 // pred_region
      _
    $region5: #{tpu_custom_call.1} parent=1 // pred_fallthru
      _
    // Predicated region
    $region6: #{tpu_custom_call.1} parent=1 // pred_check
      _
    $region7: #{tpu_custom_call.1} parent=1 // pred_check_branch
      %15 = sbr.rel (0) target = $region9
    $region8: #{tpu_custom_call.1} parent=1 // pred_region
      %s16 = sadd.s32 0, 0
      %p17 = scmp.lt.s32.totalorder %s16, 0
      %s18 = scalar_select %p17, %s16, 0
      %s19 = smul.addr %s18, 4
      %s20 = scalar_lea.vmem %s1, %s19
      %s21 = sadd.s32 0, 0
    $region9: #{tpu_custom_call.1} parent=1 // pred_fallthru
      _
    %s22 = sadd.s32 0, 0
    %p23 = scmp.lt.s32.totalorder %s22, 0
    %s24 = scalar_select %p23, %s22, 0
    %s25 = smul.addr %s24, 4
    %s26 = scalar_lea.vmem %s1, %s25
    %s27 = sadd.s32 0, 0
    %p28 = scmp.lt.s32.totalorder %s27, 0
    %s29 = scalar_select %p28, %s27, 0
    %s30 = smul.addr %s29, 4
    %s31 = scalar_lea.vmem %s1, %s30
    %s32 = sadd.s32 0, 0
    %p34 = scmp.eq.s32.totalorder 0, 0
    // Predicated region
    $region10: #{tpu_custom_call.1} parent=1 // pred_check
      %p35 = pneg %p34
    $region11: #{tpu_custom_call.1} parent=1 // pred_check_branch
      %37 = sbr.rel (%p35) target = $region13
    $region12: #{tpu_custom_call.1} parent=1 // pred_region
      %38 = vst [vmem:[#allocation2] sm:$0x1] 0.0
      %39 = vst [vmem:[#allocation3] sm:$0x1] 0.0
      %40 = vst [vmem:[#allocation4] sm:$0x1] 0.0
    $region13: #{tpu_custom_call.1} parent=1 // pred_fallthru
      _
    %v41 = vld [vmem:[%s0] sm:$0xf]
    %v42 = vld [vmem:[%s0 + $0x4] sm:$0xf]
    %v43 = vld [vmem:[%s0 + $0x8] sm:$0xf]
    %v44 = vld [vmem:[%s0 + $0xc] sm:$0xf]
    %v45 = vld [vmem:[%s0 + $0x10] sm:$0xf]
    %v46 = vld [vmem:[%s0 + $0x14] sm:$0xf]
    %v47 = vld [vmem:[%s0 + $0x18] sm:$0xf]
    %v48 = vld [vmem:[%s0 + $0x1c] sm:$0xf]
    %v49 = vld [vmem:[%s0 + $0x20] sm:$0x1]
    %v50 = vld [vmem:[%s31] sm:$0x7]
    %v51 = vlaneseq
    %v52 = vshrl.u32 %v51, 7
    %v53 = vadd.s32 %v52, 8
    %v54 = vadd.s32 %v52, 16
    %v55 = vadd.s32 %v52, 24
    %v56 = vadd.s32 %v52, 32
    %v57 = vadd.s32 %v52, 40
    %v58 = vadd.s32 %v52, 48
    %v59 = vadd.s32 %v52, 56
    %v60 = vperm.slane %v50, 0
    %vm61 = vcmp.eq.s32.totalorder %v60, %v52
    %vm62 = vcmp.eq.s32.totalorder %v60, %v53
    %vm63 = vcmp.eq.s32.totalorder %v60, %v54
    %vm64 = vcmp.eq.s32.totalorder %v60, %v55
    %vm65 = vcmp.eq.s32.totalorder %v60, %v56
    %vm66 = vcmp.eq.s32.totalorder %v60, %v57
    %vm67 = vcmp.eq.s32.totalorder %v60, %v58
    %vm68 = vcmp.eq.s32.totalorder %v60, %v59
    %v69 = vsel %vm61, 1, 0
    %v70 = vsel %vm62, 1, 0
    %v71 = vsel %vm63, 1, 0
    %v72 = vsel %vm64, 1, 0
    %v73 = vsel %vm65, 1, 0
    %v74 = vsel %vm66, 1, 0
    %v75 = vsel %vm67, 1, 0
    %v76 = vsel %vm68, 1, 0
    %v77 = vcvt.s32.f32 %v69
    %v78 = vcvt.s32.f32 %v70
    %v79 = vcvt.s32.f32 %v71
    %v80 = vcvt.s32.f32 %v72
    %v81 = vcvt.s32.f32 %v73
    %v82 = vcvt.s32.f32 %v74
    %v83 = vcvt.s32.f32 %v75
    %v84 = vcvt.s32.f32 %v76
    %v85 = vperm.slane %v50, 1
    %vm86 = vcmp.eq.s32.totalorder %v85, %v52
    %vm87 = vcmp.eq.s32.totalorder %v85, %v53
    %vm88 = vcmp.eq.s32.totalorder %v85, %v54
    %vm89 = vcmp.eq.s32.totalorder %v85, %v55
    %vm90 = vcmp.eq.s32.totalorder %v85, %v56
    %vm91 = vcmp.eq.s32.totalorder %v85, %v57
    %vm92 = vcmp.eq.s32.totalorder %v85, %v58
    %vm93 = vcmp.eq.s32.totalorder %v85, %v59
    %v94 = vsel %vm86, 1, 0
    %v95 = vsel %vm87, 1, 0
    %v96 = vsel %vm88, 1, 0
    %v97 = vsel %vm89, 1, 0
    %v98 = vsel %vm90, 1, 0
    %v99 = vsel %vm91, 1, 0
    %v100 = vsel %vm92, 1, 0
    %v101 = vsel %vm93, 1, 0
    %v102 = vcvt.s32.f32 %v94
    %v103 = vcvt.s32.f32 %v95
    %v104 = vcvt.s32.f32 %v96
    %v105 = vcvt.s32.f32 %v97
    %v106 = vcvt.s32.f32 %v98
    %v107 = vcvt.s32.f32 %v99
    %v108 = vcvt.s32.f32 %v100
    %v109 = vcvt.s32.f32 %v101
    %v110 = vperm.slane %v50, 2
    %vm111 = vcmp.eq.s32.totalorder %v110, %v52
    %vm112 = vcmp.eq.s32.totalorder %v110, %v53
    %vm113 = vcmp.eq.s32.totalorder %v110, %v54
    %vm114 = vcmp.eq.s32.totalorder %v110, %v55
    %vm115 = vcmp.eq.s32.totalorder %v110, %v56
    %vm116 = vcmp.eq.s32.totalorder %v110, %v57
    %vm117 = vcmp.eq.s32.totalorder %v110, %v58
    %vm118 = vcmp.eq.s32.totalorder %v110, %v59
    %v119 = vsel %vm111, 1, 0
    %v120 = vsel %vm112, 1, 0
    %v121 = vsel %vm113, 1, 0
    %v122 = vsel %vm114, 1, 0
    %v123 = vsel %vm115, 1, 0
    %v124 = vsel %vm116, 1, 0
    %v125 = vsel %vm117, 1, 0
    %v126 = vsel %vm118, 1, 0
    %v127 = vcvt.s32.f32 %v119
    %v128 = vcvt.s32.f32 %v120
    %v129 = vcvt.s32.f32 %v121
    %v130 = vcvt.s32.f32 %v122
    %v131 = vcvt.s32.f32 %v123
    %v132 = vcvt.s32.f32 %v124
    %v133 = vcvt.s32.f32 %v125
    %v134 = vcvt.s32.f32 %v126
    %v135 = vpack.c.bf16 %v78, %v77
    %v136 = vpack.c.bf16 %v80, %v79
    %v137 = vpack.c.bf16 %v82, %v81
    %v138 = vpack.c.bf16 %v84, %v83
    %v139 = vsub.f32 %v102, %v127
    %v140 = vsub.f32 %v103, %v128
    %v141 = vsub.f32 %v104, %v129
    %v142 = vsub.f32 %v105, %v130
    %v143 = vsub.f32 %v106, %v131
    %v144 = vsub.f32 %v107, %v132
    %v145 = vsub.f32 %v108, %v133
    %v146 = vsub.f32 %v109, %v134
    %v147 = vpack.c.bf16 %v140, %v139
    %v148 = vpack.c.bf16 %v142, %v141
    %v149 = vpack.c.bf16 %v144, %v143
    %v150 = vpack.c.bf16 %v146, %v145
    %v151 = vadd.f32 %v77, %v102
    %v152 = vadd.f32 %v78, %v103
    %v153 = vadd.f32 %v79, %v104
    %v154 = vadd.f32 %v80, %v105
    %v155 = vadd.f32 %v81, %v106
    %v156 = vadd.f32 %v82, %v107
    %v157 = vadd.f32 %v83, %v108
    %v158 = vadd.f32 %v84, %v109
    %v159 = vadd.f32 %v151, %v127
    %v160 = vadd.f32 %v152, %v128
    %v161 = vadd.f32 %v153, %v129
    %v162 = vadd.f32 %v154, %v130
    %v163 = vadd.f32 %v155, %v131
    %v164 = vadd.f32 %v156, %v132
    %v165 = vadd.f32 %v157, %v133
    %v166 = vadd.f32 %v158, %v134
    %v167 = vpack.c.bf16 %v160, %v159
    %v168 = vpack.c.bf16 %v162, %v161
    %v169 = vpack.c.bf16 %v164, %v163
    %v170 = vpack.c.bf16 %v166, %v165
    %v180 = vunpack.c.l.b16 %v41
    %v181 = vunpack.c.l.b16 %v42
    %v182 = vunpack.c.l.b16 %v43
    %v183 = vunpack.c.l.b16 %v44
    %v184 = vunpack.c.l.b16 %v45
    %v185 = vunpack.c.l.b16 %v46
    %v186 = vunpack.c.l.b16 %v47
    %v187 = vunpack.c.l.b16 %v48
    %v188 = vunpack.c.l.b16 %v49
    %v189 = vpack.c.b16 %v181, %v180
    %v190 = vpack.c.b16 %v183, %v182
    %v191 = vpack.c.b16 %v185, %v184
    %v192 = vpack.c.b16 %v187, %v186
    %v193 = vpack.c.b16 %v188, %v188
    %vm194 = vcmask 523264
    %v196 = vsel %vm194, %v189, 0
    %v199 = vsel %vm194, %v190, 0
    %v202 = vsel %vm194, %v191, 0
    %v205 = vsel %vm194, %v192, 0
    %v208 = vsel %vm194, %v193, 0
    %210 = vmatpush.bf16.msra.mxu0 0
    %211 = vmatpush.bf16.msra.mxu0 0
    %212 = vmatpush.bf16.msra.mxu0 0
    %213 = vmatpush.bf16.msra.mxu0 0
    %214 = vmatpush.bf16.msra.mxu0 %v138
    %215 = vmatpush.bf16.msra.mxu0 %v137
    %216 = vmatpush.bf16.msra.mxu0 %v136
    %217 = vmatpush.bf16.msra.mxu0 %v135
    %218 = vmatmul.bf16.gmra.mxu0 %v196
    %v219 = vpop.f32.mrf.mxu0
    %v220 = vadd.f32 0.0, %v219
    %v221 = vpop.f32.mrf.mxu0
    %v222 = vadd.f32 0.0, %v221
    %223 = vmatmul.bf16.gmra.mxu0 %v199
    %v224 = vpop.f32.mrf.mxu0
    %v225 = vadd.f32 0.0, %v224
    %v226 = vpop.f32.mrf.mxu0
    %v227 = vadd.f32 0.0, %v226
    %228 = vmatmul.bf16.gmra.mxu0 %v202
    %v229 = vpop.f32.mrf.mxu0
    %v230 = vadd.f32 0.0, %v229
    %v231 = vpop.f32.mrf.mxu0
    %v232 = vadd.f32 0.0, %v231
    %233 = vmatmul.bf16.gmra.mxu0 %v205
    %v234 = vpop.f32.mrf.mxu0
    %v235 = vadd.f32 0.0, %v234
    %v236 = vpop.f32.mrf.mxu0
    %v237 = vadd.f32 0.0, %v236
    %238 = vmatmul.bf16.gmra.mxu0 %v208
    %v239 = vpop.f32.mrf.mxu0
    %v240 = vpop.f32.mrf.mxu0
    %241 = vdwg.mxu0
    %242 = vmatpush.bf16.msra.mxu0 0
    %243 = vmatpush.bf16.msra.mxu0 0
    %244 = vmatpush.bf16.msra.mxu0 0
    %245 = vmatpush.bf16.msra.mxu0 0
    %246 = vmatpush.bf16.msra.mxu0 %v150
    %247 = vmatpush.bf16.msra.mxu0 %v149
    %248 = vmatpush.bf16.msra.mxu0 %v148
    %249 = vmatpush.bf16.msra.mxu0 %v147
    %250 = vmatmul.bf16.gmra.mxu0 %v196
    %v251 = vpop.f32.mrf.mxu0
    %v252 = vadd.f32 0.0, %v251
    %v253 = vpop.f32.mrf.mxu0
    %v254 = vadd.f32 0.0, %v253
    %255 = vmatmul.bf16.gmra.mxu0 %v199
    %v256 = vpop.f32.mrf.mxu0
    %v257 = vadd.f32 0.0, %v256
    %v258 = vpop.f32.mrf.mxu0
    %v259 = vadd.f32 0.0, %v258
    %260 = vmatmul.bf16.gmra.mxu0 %v202
    %v261 = vpop.f32.mrf.mxu0
    %v262 = vadd.f32 0.0, %v261
    %v263 = vpop.f32.mrf.mxu0
    %v264 = vadd.f32 0.0, %v263
    %265 = vmatmul.bf16.gmra.mxu0 %v205
    %v266 = vpop.f32.mrf.mxu0
    %v267 = vadd.f32 0.0, %v266
    %v268 = vpop.f32.mrf.mxu0
    %v269 = vadd.f32 0.0, %v268
    %270 = vmatmul.bf16.gmra.mxu0 %v208
    %v271 = vpop.f32.mrf.mxu0
    %v272 = vpop.f32.mrf.mxu0
    %273 = vdwg.mxu0
    %274 = vmatpush.bf16.msra.mxu0 0
    %275 = vmatpush.bf16.msra.mxu0 0
    %276 = vmatpush.bf16.msra.mxu0 0
    %277 = vmatpush.bf16.msra.mxu0 0
    %278 = vmatpush.bf16.msra.mxu0 %v170
    %279 = vmatpush.bf16.msra.mxu0 %v169
    %280 = vmatpush.bf16.msra.mxu0 %v168
    %281 = vmatpush.bf16.msra.mxu0 %v167
    %282 = vmatmul.bf16.gmra.mxu0 %v196
    %v283 = vpop.f32.mrf.mxu0
    %v284 = vpop.f32.mrf.mxu0
    %285 = vmatmul.bf16.gmra.mxu0 %v199
    %v286 = vpop.f32.mrf.mxu0
    %v287 = vpop.f32.mrf.mxu0
    %288 = vmatmul.bf16.gmra.mxu0 %v202
    %v289 = vpop.f32.mrf.mxu0
    %v290 = vpop.f32.mrf.mxu0
    %291 = vmatmul.bf16.gmra.mxu0 %v205
    %v292 = vpop.f32.mrf.mxu0
    %v293 = vpop.f32.mrf.mxu0
    %294 = vmatmul.bf16.gmra.mxu0 %v208
    %v295 = vpop.f32.mrf.mxu0
    %v296 = vadd.f32 0.0, %v295
    %v297 = vpop.f32.mrf.mxu0
    %298 = vdwg.mxu0
    %v299 = vadd.f32 %v220, %v230
    %v300 = vadd.f32 %v222, %v232
    %v301 = vadd.f32 %v225, %v235
    %v302 = vadd.f32 %v227, %v237
    %v303 = vadd.f32 %v252, %v262
    %v304 = vadd.f32 %v254, %v264
    %v305 = vadd.f32 %v257, %v267
    %v306 = vadd.f32 %v259, %v269
    %vm307 = vcmask 1041408
    %v308 = vsel %vm307, %v296, 0.0
    %v309 = vrot.slane %v308, 4
    %v310 = vadd.f32 %v308, %v309
    %v311 = vrot.slane %v310, 2
    %v312 = vadd.f32 %v310, %v311
    %v313 = vrot.slane %v312, 1
    %v314 = vadd.f32 %v312, %v313
    %v315 = vmul.f32 %v299, %v303
    %v316 = vmul.f32 %v300, %v304
    %v317 = vmul.f32 %v301, %v305
    %v318 = vmul.f32 %v302, %v306
    %v319 = vadd.f32 %v315, %v316
    %v320 = vadd.f32 %v319, %v317
    %v321 = vadd.f32 %v320, %v318
    %v322 = vrot.slane %v321, 4
    %v323 = vadd.f32 %v321, %v322
    %v324 = vrot.slane %v323, 2
    %v325 = vadd.f32 %v323, %v324
    %v326 = vrot.slane %v325, 1
    %v327 = vadd.f32 %v325, %v326
    %v328 = vmin.f32 %v327, 0.0
    %v329 = vand.u32 2147483647, %v327
    %v330 = vsub.f32 0.0, %v329
    %v331 = vmul.f32 %v330, 1.442695
    %v332 = vpow.pop %v331
    %v333 = vadd.f32 %v332, 1.0
    %v334 = vlog2.pop %v333
    %v335 = vmul.f32 %v334, 0.6931472
    %v336 = vsub.f32 %v328, %v335
    %s337 = sadd.s32 0, 0
    %v338 = vlaneseq
    %v339 = vand.u32 %v338, 127
    %s340 = smul.u32 %s337, 128
    %v341 = vstv %s340
    %v342 = vadd.s32 %v339, %v341
    %vm343 = vcmp.lt.s32.totalorder %v342, 8
    %v344 = vsel %vm343, 1, 0
    %v345 = vcvt.s32.f32 %v344
    %v346 = vld [vmem:[#allocation2] sm:$0x1]
    %v347 = vmul.f32 %v336, %v345
    %v348 = vadd.f32 %v346, %v347
    %349 = vst [vmem:[#allocation2] sm:$0x1] %v348
    %v350 = vld [vmem:[#allocation4] sm:$0x1]
    %vm351 = vcmp.gt.f32.partialorder %v327, 0.0
    %v352 = vsel %vm351, 1, 0
    %v353 = vcvt.s32.f32 %v352
    %v354 = vmul.f32 %v353, %v345
    %v355 = vadd.f32 %v350, %v354
    %356 = vst [vmem:[#allocation4] sm:$0x1] %v355
    %v357 = vld [vmem:[#allocation3] sm:$0x1]
    %v358 = vmul.f32 %v314, %v345
    %v359 = vadd.f32 %v357, %v358
    %360 = vst [vmem:[#allocation3] sm:$0x1] %v359
    // Predicated region
    $region14: #{tpu_custom_call.1} parent=1 // pred_check
      %p361 = pneg %p34
    $region15: #{tpu_custom_call.1} parent=1 // pred_check_branch
      %363 = sbr.rel (%p361) target = $region17
    $region16: #{tpu_custom_call.1} parent=1 // pred_region
      %v364 = vld [vmem:[#allocation2] sm:$0x1]
      %vm365 = vcmask 1040384
      %v366 = vsel %vm365, %v364, 0.0
      %367 = vadd.xlane.f32.xlu0 %v366
      %v368 = vpop.xlane.xlu0 %367
      %v369 = vrot.slane %v368, 4
      %v370 = vadd.f32 %v368, %v369
      %v371 = vrot.slane %v370, 2
      %v372 = vadd.f32 %v370, %v371
      %v373 = vrot.slane %v372, 1
      %v374 = vadd.f32 %v372, %v373
      %s375 = vtos %v374
      %v376 = vstv %s375
      %vm377 = vcmask 0
      %378 = vst.msk [vmem:[#allocation5] sm:$0x1] %vm377, %v376
      %v379 = vld [vmem:[#allocation4] sm:$0x1]
      %v380 = vsel %vm365, %v379, 0.0
      %381 = vadd.xlane.f32.xlu0 %v380
      %v382 = vpop.xlane.xlu0 %381
      %v383 = vrot.slane %v382, 4
      %v384 = vadd.f32 %v382, %v383
      %v385 = vrot.slane %v384, 2
      %v386 = vadd.f32 %v384, %v385
      %v387 = vrot.slane %v386, 1
      %v388 = vadd.f32 %v386, %v387
      %s389 = vtos %v388
      %v390 = vstv %s389
      %391 = vst.msk [vmem:[#allocation9] sm:$0x1] %vm377, %v390
      %v392 = vld [vmem:[#allocation3] sm:$0x1]
      %v393 = vsel %vm365, %v392, 0.0
      %394 = vadd.xlane.f32.xlu0 %v393
      %v395 = vpop.xlane.xlu0 %394
      %v396 = vrot.slane %v395, 4
      %v397 = vadd.f32 %v395, %v396
      %v398 = vrot.slane %v397, 2
      %v399 = vadd.f32 %v397, %v398
      %v400 = vrot.slane %v399, 1
      %v401 = vadd.f32 %v399, %v400
      %s402 = vtos %v401
      %v403 = vstv %s402
      %404 = vst.msk [vmem:[#allocation7] sm:$0x1] %vm377, %v403
    $region17: #{tpu_custom_call.1} parent=1 // pred_fallthru
      _
    // Predicated region
    $region18: #{tpu_custom_call.1} parent=1 // pred_check
      _
    $region19: #{tpu_custom_call.1} parent=1 // pred_check_branch
      %406 = sbr.rel (0) target = $region21
    $region20: #{tpu_custom_call.1} parent=1 // pred_region
      %408 = vsyncadd [#allocation6], 0
      %s410 = sshll.u32 [#allocation5], 4
      %s411 = int_to_ptr.vmem [resolvable:$true] %s410
      %s412 = sshll.u32 %s2, 4
      %s413 = int_to_ptr.hbm [resolvable:$true] %s412
      %415 = dma.vmem_to_hbm [thread:$0]  %s411, 16, %s413, [#allocation6]
    $region21: #{tpu_custom_call.1} parent=1 // pred_fallthru
      _
    // Predicated region
    $region22: #{tpu_custom_call.1} parent=1 // pred_check
      _
    $region23: #{tpu_custom_call.1} parent=1 // pred_check_branch
      %417 = sbr.rel (0) target = $region25
    $region24: #{tpu_custom_call.1} parent=1 // pred_region
      %419 = vsyncadd [#allocation8], 0
      %s421 = sshll.u32 [#allocation7], 4
      %s422 = int_to_ptr.vmem [resolvable:$true] %s421
      %s423 = sshll.u32 %s3, 4
      %s424 = int_to_ptr.hbm [resolvable:$true] %s423
      %426 = dma.vmem_to_hbm [thread:$0]  %s422, 16, %s424, [#allocation8]
    $region25: #{tpu_custom_call.1} parent=1 // pred_fallthru
      _
    // Predicated region
    $region26: #{tpu_custom_call.1} parent=1 // pred_check
      _
    $region27: #{tpu_custom_call.1} parent=1 // pred_check_branch
      %428 = sbr.rel (0) target = $region29
    $region28: #{tpu_custom_call.1} parent=1 // pred_region
      %430 = vsyncadd [#allocation8], 0
      %s432 = sshll.u32 [#allocation9], 4
      %s433 = int_to_ptr.vmem [resolvable:$true] %s432
      %s434 = sshll.u32 %s4, 4
      %s435 = int_to_ptr.hbm [resolvable:$true] %s434
      %437 = dma.vmem_to_hbm [thread:$0]  %s433, 16, %s435, [#allocation8]
    $region29: #{tpu_custom_call.1} parent=1 // pred_fallthru
      _
    // Predicated region
    $region30: #{tpu_custom_call.1} parent=1 // pred_check
      _
    $region31: #{tpu_custom_call.1} parent=1 // pred_check_branch
      %439 = sbr.rel (0) target = $region33
    $region32: #{tpu_custom_call.1} parent=1 // pred_region
      %441 = dma.done [#allocation6], 16
    $region33: #{tpu_custom_call.1} parent=1 // pred_fallthru
      _
    // Predicated region
    $region34: #{tpu_custom_call.1} parent=1 // pred_check
      _
    $region35: #{tpu_custom_call.1} parent=1 // pred_check_branch
      %443 = sbr.rel (0) target = $region37
    $region36: #{tpu_custom_call.1} parent=1 // pred_region
      %445 = dma.done [#allocation8], 16
    $region37: #{tpu_custom_call.1} parent=1 // pred_fallthru
      _
    // Predicated region
    $region38: #{tpu_custom_call.1} parent=1 // pred_check
      _
    $region39: #{tpu_custom_call.1} parent=1 // pred_check_branch
      %447 = sbr.rel (0) target = $region41
    $region40: #{tpu_custom_call.1} parent=1 // pred_region
      %449 = dma.done [#allocation8], 16
    $region41: #{tpu_custom_call.1} parent=1 // pred_fallthru
      _
    %450 = vsyncpa [#allocation6], 1
    %451 = vsyncpa [#allocation8], 1

</llo_original>
